<compile_context>
chip_gen: v6e
topology: v6e:2x2x1
jax: 0.10.0
libtpu: 0.0.40
codegen_flags: <defaults>
</compile_context>

<pallas_src>
import math

import numpy as np

import jax
import jax.numpy as jnp
from jax.experimental import pallas as pl
from jax.experimental.pallas import tpu as pltpu


_LANE = 128
_SUBLANE = {4: 8, 2: 16, 1: 32}  # itemsize -> sublane packing


def _device_kind():
    try:
        return jax.devices()[0].device_kind.lower()
    except Exception:
        return ""


def _target_tile_bytes():
    kind = _device_kind()
    # v6e/v7x: 32 MiB default scoped-VMEM limit -> 4 MiB tiles (<= 3 refs x 2
    # pipeline buffers = 24 MiB) amortize the ~0.35us per-grid-step overhead.
    # v5e (and unknown): 16 MiB default scoped limit -> stay at 2 MiB tiles.
    if "v6" in kind or "v7" in kind or "7x" in kind:
        return 4 * 1024 * 1024
    return 2 * 1024 * 1024


def _default_min_pallas_bytes():
    kind = _device_kind()
    # On v7x (~3.2 TB/s HBM) a <4 MiB problem is launch/DMA-setup dominated;
    # XLA fuses the select into one pass anyway.
    if "v7" in kind or "7x" in kind:
        return 4 * 1024 * 1024
    return 1 * 1024 * 1024


def _as_static_int(x):
    if isinstance(x, bool):
        return None
    if isinstance(x, (int, np.integer)):
        return int(x)
    return None


def _make_static_kernel(idim):
    """Kernel variant with a compile-time interchange_dim."""
    def kernel(base_ref, src_ref, out_ref):
        d = base_ref.shape[-1]
        lane = jax.lax.broadcasted_iota(jnp.int32, (1, d), 1)
        # (1, d) mask and possibly (1, d) src broadcast across the TR rows.
        out_ref[...] = jnp.where(lane < idim, src_ref[...], base_ref[...])
    return kernel


def _dynamic_kernel(idim_ref, base_ref, src_ref, out_ref):
    """Kernel variant with interchange_dim read from an SMEM scalar."""
    d = base_ref.shape[-1]
    lane = jax.lax.broadcasted_iota(jnp.int32, (1, d), 1)
    out_ref[...] = jnp.where(lane < idim_ref[0], src_ref[...], base_ref[...])


def _interchange_prefix_pallas(base2, src2, idim_arr, static_idim, src_is_row):
    """base2: (n, d); src2: (n, d) or (1, d); replace the first idim lanes."""
    n, d = base2.shape
    dtype = base2.dtype
    itemsize = jnp.dtype(dtype).itemsize
    sub = _SUBLANE.get(itemsize, 8)

    # Static interchange_dim -> only stream / rewrite the first
    # ceil(idim/128)*128 columns.  The untouched column suffix of the output
    # keeps base's values because the output buffer is aliased to base.
    if static_idim is not None and static_idim < d:
        dc = min(pl.cdiv(static_idim, _LANE) * _LANE, d)
    else:
        dc = d

    # Row tile: big enough to amortize per-grid-step overhead, small enough
    # that <=3 refs x 2 pipeline buffers fit the default scoped-VMEM limit,
    # and capped so the grid has >= ~8 blocks (keeps both v7x TCs streaming).
    if n <= sub:
        tr = n                      # block dim == full array dim is legal
        num_blocks = 1
    else:
        tile_bytes = _target_tile_bytes()
        tr = max(sub, (tile_bytes // max(1, dc * itemsize)) // sub * sub)
        tr_cap = max(sub, pl.cdiv(pl.cdiv(n, 8), sub) * sub)
        tr = min(tr, tr_cap)
        num_blocks = pl.cdiv(n, tr)  # ragged tail -> partial last block

    row_spec = pl.BlockSpec((tr, dc), lambda i: (i, 0))
    if src_is_row:
        # Constant / row source: a single (1, dc) block reused by every step.
        src_spec = pl.BlockSpec((1, dc), lambda i: (0, 0))
    else:
        src_spec = row_spec

    if static_idim is not None:
        kernel = _make_static_kernel(static_idim)
        in_specs = [row_spec, src_spec]
        args = (base2, src2)
        alias = {0: 0}              # base2 -> output (unambiguous: no prefetch)
    else:
        kernel = _dynamic_kernel
        # interchange_dim as a plain SMEM operand (not scalar prefetch), so
        # input_output_aliases indices are plain positional-operand indices.
        in_specs = [pl.BlockSpec(memory_space=pltpu.MemorySpace.SMEM),
                    row_spec, src_spec]
        args = (idim_arr, base2, src2)
        alias = {1: 0}              # base2 is operand 1

    return pl.pallas_call(
        kernel,
        out_shape=jax.ShapeDtypeStruct((n, d), dtype),
        grid=(num_blocks,),
        in_specs=in_specs,
        out_specs=row_spec,
        input_output_aliases=alias,
        compiler_params=pltpu.CompilerParams(
            dimension_semantics=("parallel",)),
    )(*args)


class BaseInterventionPallas:
    """JAX/Pallas port of BaseIntervention (contiguous-prefix interchange)."""

    def __init__(self, embed_dim=None, source_representation=None,
                 hidden_source_representation=None,
                 keep_last_dim=False, use_fast=False, subspace_partition=None,
                 min_pallas_bytes=None):
        self.trainable = False
        self.is_source_constant = False
        # NOTE: keep_last_dim / use_fast / subspace_partition are stored for
        # parity with the PyTorch module but do not affect the prefix path.
        self.keep_last_dim = keep_last_dim
        self.use_fast = use_fast
        self.subspace_partition = subspace_partition
        if self.subspace_partition is not None:
            expanded = []
            for subspace in self.subspace_partition:
                if len(subspace) == 2 and isinstance(subspace[0], int):
                    expanded.append(list(range(subspace[0], subspace[1])))
                else:
                    expanded.append(subspace)
            self.subspace_partition = expanded

        self._static_interchange_dim = None
        if embed_dim is not None:
            self.embed_dim = jnp.asarray(embed_dim, dtype=jnp.int32)
            self.interchange_dim = embed_dim
            self._static_interchange_dim = _as_static_int(embed_dim)
        else:
            self.embed_dim = None
            self.interchange_dim = None

        if source_representation is not None:
            self.is_source_constant = True
            self.source_representation = jnp.asarray(source_representation)
        elif hidden_source_representation is not None:
            self.is_source_constant = True
            self.source_representation = None
        else:
            self.source_representation = None

        self.min_pallas_bytes = (_default_min_pallas_bytes()
                                 if min_pallas_bytes is None
                                 else min_pallas_bytes)

    def set_source_representation(self, source_representation):
        self.is_source_constant = True
        self.source_representation = jnp.asarray(source_representation)

    def set_interchange_dim(self, interchange_dim):
        self._static_interchange_dim = _as_static_int(interchange_dim)
        self.interchange_dim = interchange_dim

    def __call__(self, base, source=None, subspaces=None):
        if subspaces is not None:
            # TODO(synk): subspaces index-list routing not supported here.
            raise NotImplementedError(
                "per-call `subspaces` routing is not implemented; only the "
                "contiguous interchange_dim prefix path is supported")
        if source is None:
            source = self.source_representation
        assert source is not None, "no source provided and no constant source set"

        base = jnp.asarray(base)
        source = jnp.asarray(source, dtype=base.dtype)
        d = base.shape[-1]

        # Resolve interchange_dim (static Python int vs. runtime scalar).
        idim = self.interchange_dim
        static_idim = self._static_interchange_dim
        if idim is None:
            static_idim = d
        idim_arr = None
        if static_idim is not None:
            static_idim = min(int(static_idim), d)
            if static_idim <= 0:
                return base
            if static_idim >= d:
                # Whole hidden dim replaced: no need to touch base at all.
                return jnp.broadcast_to(source, base.shape)
        else:
            idim_arr = jnp.reshape(jnp.asarray(idim, dtype=jnp.int32), (1,))

        # Small-input fallback: launch + DMA setup would dominate; XLA fuses
        # this select into a single pass.
        nbytes = base.size * jnp.dtype(base.dtype).itemsize
        if nbytes < self.min_pallas_bytes:
            lane = jnp.arange(d, dtype=jnp.int32)
            thresh = static_idim if static_idim is not None else idim_arr[0]
            return jnp.where(lane < thresh, source, base)

        # Pallas path: flatten to (n, d); keep row-shaped sources as (1, d).
        orig_shape = base.shape
        n = base.size // d
        base2 = base.reshape(n, d)
        src_is_row = (source.shape[-1] == d
                      and math.prod(source.shape[:-1]) == 1)
        if src_is_row:
            src2 = source.reshape(1, d)
        else:
            if source.shape != base.shape:
                source = jnp.broadcast_to(source, base.shape)
            src2 = source.reshape(n, d)

        out2 = _interchange_prefix_pallas(base2, src2, idim_arr,
                                          static_idim, src_is_row)
        return out2.reshape(orig_shape)


if __name__ == "__main__":
    key = jax.random.PRNGKey(0)
    keys = jax.random.split(key, 8)

    def ref_interchange(b, s, idim):
        s = jnp.broadcast_to(s.astype(b.dtype), b.shape)
        return jnp.concatenate([s[..., :idim], b[..., idim:]], axis=-1)

    ok = True

    # 1) Small demo shape: exercises the plain-XLA small-input fallback.
    B, S, D = 2, 8, 128
    base = jax.random.normal(keys[0], (B, S, D), dtype=jnp.float32)
    src = jax.random.normal(keys[1], (B, S, D), dtype=jnp.float32)
    m = BaseInterventionPallas(embed_dim=D)
    m.set_interchange_dim(48)
    out = jax.block_until_ready(m(base, src))
    ok &= bool(jnp.allclose(out, ref_interchange(base, src, 48)))

    # 2) Force Pallas: static idim << D with column restriction (dc=128<160),
    #    D not a multiple of 128, row count not a multiple of 8 (partial
    #    blocks + aliased untouched suffix).
    B, S, D = 1, 5, 160
    base = jax.random.normal(keys[2], (B, S, D), dtype=jnp.float32)
    src = jax.random.normal(keys[3], (B, S, D), dtype=jnp.float32)
    m = BaseInterventionPallas(embed_dim=D, min_pallas_bytes=0)
    m.set_interchange_dim(48)
    out = jax.block_until_ready(m(base, src))
    ok &= bool(jnp.allclose(out, ref_interchange(base, src, 48)))

    # 3) Force Pallas: bf16 + constant (D,)-shaped source representation
    #    (row fast path, no broadcast_to) + static idim.
    B, S, D = 3, 16, 128
    base = jax.random.normal(keys[4], (B, S, D), dtype=jnp.bfloat16)
    const_src = (jnp.arange(D, dtype=jnp.float32) * 0.01).astype(jnp.bfloat16)
    m = BaseInterventionPallas(embed_dim=D, source_representation=const_src,
                               min_pallas_bytes=0)
    m.set_interchange_dim(96)
    out = jax.block_until_ready(m(base))
    ok &= bool(jnp.allclose(out, ref_interchange(base, const_src, 96)))

    # 4) Force Pallas: runtime (array-valued) interchange_dim via the SMEM
    #    scalar path, full per-call source.
    B, S, D = 2, 16, 256
    base = jax.random.normal(keys[5], (B, S, D), dtype=jnp.float32)
    src = jax.random.normal(keys[6], (B, S, D), dtype=jnp.float32)
    m = BaseInterventionPallas(embed_dim=D, min_pallas_bytes=0)
    m.set_interchange_dim(jnp.asarray(100, dtype=jnp.int32))  # non-static
    out = jax.block_until_ready(m(base, src))
    ok &= bool(jnp.allclose(out, ref_interchange(base, src, 100)))

    assert ok, "mismatch vs reference"
    print("KERNEL_OK")
</pallas_src>

<mosaic_0001>
module attributes {stable_mosaic.version = 11 : i64} {
  func.func @kernel(%arg0: i32, %arg1: memref<5x128xf32, #tpu.memory_space<vmem>>, %arg2: memref<5x128xf32, #tpu.memory_space<vmem>>, %arg3: memref<5x128xf32, #tpu.memory_space<vmem>>) attributes {dimension_semantics = [#tpu.dimension_semantics<parallel>], iteration_bounds = array<i64: 1>, scalar_prefetch = 0 : i64, scratch_operands = 0 : i64, tpu.core_type = #tpu.core_type<tc>, window_params = [{transform_indices = @transform_0, window_bounds = array<i64: 5, 128>}, {transform_indices = @transform_1, window_bounds = array<i64: 5, 128>}, {transform_indices = @transform_2, window_bounds = array<i64: 5, 128>}]} {
    %0 = tpu.iota {dimensions = array<i32: 1>} : vector<1x128xi32>
    %c48_i32 = arith.constant 48 : i32
    %1 = vector.broadcast %c48_i32 : i32 to vector<1x128xi32>
    %2 = arith.cmpi slt, %0, %1 : vector<1x128xi32>
    %c0 = arith.constant 0 : index
    %c0_0 = arith.constant 0 : index
    %3 = vector.load %arg2[%c0, %c0_0] : memref<5x128xf32, #tpu.memory_space<vmem>>, vector<5x128xf32>
    %c0_1 = arith.constant 0 : index
    %c0_2 = arith.constant 0 : index
    %4 = vector.load %arg1[%c0_1, %c0_2] : memref<5x128xf32, #tpu.memory_space<vmem>>, vector<5x128xf32>
    %5 = vector.shape_cast %2 : vector<1x128xi1> to vector<1x128xi1>
    %6 = vector.broadcast %5 : vector<1x128xi1> to vector<5x128xi1>
    %7 = arith.select %6, %3, %4 : vector<5x128xi1>, vector<5x128xf32>
    %c0_3 = arith.constant 0 : index
    %c0_4 = arith.constant 0 : index
    %8 = vector.load %arg3[%c0_3, %c0_4] : memref<5x128xf32, #tpu.memory_space<vmem>>, vector<5x128xf32>
    tpu.vector_store %arg3[%c0_3, %c0_4], %7 {strides = array<i32>} : memref<5x128xf32, #tpu.memory_space<vmem>>, vector<5x128xf32>,
    return
  }
  func.func @transform_0(%arg0: i32) -> (i32, i32) {
    %c0_i32 = arith.constant 0 : i32
    %c0_i32_0 = arith.constant 0 : i32
    return %arg0, %c0_i32 : i32, i32
  }
  func.func @transform_1(%arg0: i32) -> (i32, i32) {
    %c0_i32 = arith.constant 0 : i32
    %c0_i32_0 = arith.constant 0 : i32
    return %arg0, %c0_i32 : i32, i32
  }
  func.func @transform_2(%arg0: i32) -> (i32, i32) {
    %c0_i32 = arith.constant 0 : i32
    %c0_i32_0 = arith.constant 0 : i32
    return %arg0, %c0_i32 : i32, i32
  }
}

</mosaic_0001>

<llo_original>
// kernel: tpu_custom_call.1
$region0: #{tpu_custom_call.1}
  #allocation0 [shape = 'u32[]', space=smem, size = 0x4, offset = 0x4, fixed_abs, tag = 'smem constant byte address 0x4 - core index']
  #allocation1 [shape = 'u32[144,128]{1,0:T(1,128)}', space=vmem, size = 0x12000, scoped, tag = 'internal scratch']
  %s0 = inlined_call_operand.hbm [shape: f32[5,160], index: 0, kind: input, shape index: {}, may-alias: {0,2}]
  %s1 = inlined_call_operand.vmem [shape: f32[5,160], index: 1, kind: input, shape index: {}]
  %s2 = inlined_call_operand.hbm [shape: f32[5,160], index: 2, kind: output, shape index: {}, may-alias: {0,2}]
  %s3 = sld [smem:[#allocation0]]
  $region22: #{tpu_custom_call.1} parent=0
    _
  %s5 = ssub.s32 1, %s3
  %s6 = scalar_select 0, %s5, %s3
  $region1: #{tpu_custom_call.1} parent=0
    #allocation2 [shape = 'u8[4096]{0}', space=vmem, size = 0x1000, scoped, tag = 'input window, operand 0, single buffered']
    #allocation3 [shape = 's32[1]{0}', space=sflag, size = 0x4, scoped, tag = 'scoped memory for tpu_custom_call.1']
    #allocation4 [shape = 's32[1]{0}', space=sflag, size = 0x4, scoped, tag = 'scoped memory for tpu_custom_call.1']
    #allocation5 [shape = 'u8[4096]{0}', space=vmem, size = 0x1000, scoped, tag = 'output window, operand 0, single buffered']
    %7 = vsyncpa [#allocation3], 0
    %8 = vsyncpa [#allocation4], 0
    // Predicated region
    $region2: #{tpu_custom_call.1} parent=1 // pred_check
      _
    $region3: #{tpu_custom_call.1} parent=1 // pred_check_branch
      %10 = sbr.rel (0) target = $region5
    $region4: #{tpu_custom_call.1} parent=1 // pred_region
      %s12 = ssub.s32 128, 128
      %13 = vsyncadd [#allocation3], %s12
      %s15 = sshll.u32 [#allocation2], 4
      %s16 = int_to_ptr.vmem [resolvable:$true] %s15
      %18 = dma.hbm_to_vmem [thread:$0]  %s0, 128, %s16, [#allocation3]
    $region5: #{tpu_custom_call.1} parent=1 // pred_fallthru
      _
    // Predicated region
    $region6: #{tpu_custom_call.1} parent=1 // pred_check
      _
    $region7: #{tpu_custom_call.1} parent=1 // pred_check_branch
      %20 = sbr.rel (0) target = $region9
    $region8: #{tpu_custom_call.1} parent=1 // pred_region
      _
    $region9: #{tpu_custom_call.1} parent=1 // pred_fallthru
      _
    // Predicated region
    $region10: #{tpu_custom_call.1} parent=1 // pred_check
      _
    $region11: #{tpu_custom_call.1} parent=1 // pred_check_branch
      %22 = sbr.rel (0) target = $region13
    $region12: #{tpu_custom_call.1} parent=1 // pred_region
      %23 = dma.done [#allocation3], 128
    $region13: #{tpu_custom_call.1} parent=1 // pred_fallthru
      _
    %v24 = vlaneseq
    %v25 = vand.u32 %v24, 127
    %vm26 = vcmp.lt.s32.totalorder %v25, 48
    %v27 = vld [vmem:[%s1] sm:$0x1f]
    %v28 = vld [vmem:[#allocation2] sm:$0x1f]
    %v29 = vsel %vm26, 1, 0
    %vm30 = vcmp.eq.s32.totalorder %v29, 1
    %v31 = vsel %vm30, %v27, %v28
    %32 = vst [vmem:[#allocation5] sm:$0x1f] %v31
    // Predicated region
    $region14: #{tpu_custom_call.1} parent=1 // pred_check
      _
    $region15: #{tpu_custom_call.1} parent=1 // pred_check_branch
      %34 = sbr.rel (0) target = $region17
    $region16: #{tpu_custom_call.1} parent=1 // pred_region
      %s36 = ssub.s32 128, 128
      %37 = vsyncadd [#allocation4], %s36
      %s39 = sshll.u32 [#allocation5], 4
      %s40 = int_to_ptr.vmem [resolvable:$true] %s39
      %42 = dma.vmem_to_hbm [thread:$0]  %s40, 128, %s2, [#allocation4]
    $region17: #{tpu_custom_call.1} parent=1 // pred_fallthru
      _
    // Predicated region
    $region18: #{tpu_custom_call.1} parent=1 // pred_check
      _
    $region19: #{tpu_custom_call.1} parent=1 // pred_check_branch
      %44 = sbr.rel (0) target = $region21
    $region20: #{tpu_custom_call.1} parent=1 // pred_region
      %45 = dma.done [#allocation4], 128
    $region21: #{tpu_custom_call.1} parent=1 // pred_fallthru
      _
    %46 = vsyncpa [#allocation3], 1
    %47 = vsyncpa [#allocation4], 1

</llo_original>
